<compile_context>
chip_gen: v6e
topology: v6e:2x2x1
jax: 0.10.0
libtpu: 0.0.40
codegen_flags: <defaults>
</compile_context>

<pallas_src>
import functools

import jax
import jax.numpy as jnp
from jax.experimental import pallas as pl
from jax.experimental.pallas import tpu as pltpu

GAMMA = 1.5
ALPHA = 0.25


def _cdiv(a, b):
    return (a + b - 1) // b


def _num_tensorcores():
    """Best-effort TensorCore count (2 on megacore parts, else 1)."""
    try:
        info = pltpu.get_tpu_info()
    except Exception:
        return 1
    for name in ("num_cores", "num_cores_per_chip", "cores_per_chip",
                 "core_count", "num_tensorcores", "tensorcore_count"):
        v = getattr(info, name, None)
        if isinstance(v, int) and 1 <= v <= 8:
            return v
    return 1


def _focal_elementwise(p, t, gamma, alpha):
    """Elementwise focal loss (BCE-with-logits base). p, t are float32.

    exp(-|p|) is shared between the numerically stable BCE term and the
    sigmoid (one EUP exp per element); gamma=1.5 uses x*sqrt(x) (one sqrt)
    instead of a log+exp pow.
    """
    e = jnp.exp(-jnp.abs(p))                                  # EUP
    bce = jnp.maximum(p, 0.0) - p * t + jnp.log1p(e)          # stable BCE('none')
    recip = 1.0 / (1.0 + e)
    prob = jnp.where(p >= 0.0, recip, e * recip)              # == sigmoid(p)
    x = prob + t * (1.0 - 2.0 * prob)                         # == 1 - p_t
    alpha_factor = (1.0 - alpha) + t * (2.0 * alpha - 1.0)
    if gamma == 1.5:
        mod = x * jnp.sqrt(x)                                 # x**1.5
    elif gamma == 2.0:
        mod = x * x
    elif gamma == 1.0:
        mod = x
    elif gamma == 0.0:
        mod = jnp.ones_like(x)
    else:
        mod = x ** gamma                                      # generic fallback
    return bce * alpha_factor * mod


def _focal_loss_kernel(pred_ref, true_ref, out_ref, *, gamma, alpha,
                       tile_rows, chunk, rows, steps_per_core, steps_total):
    c = pl.program_id(0)            # megacore-parallel axis
    i = pl.program_id(1)            # reduction axis (output block stays resident)

    @pl.when(i == 0)
    def _():
        out_ref[...] = jnp.zeros_like(out_ref)

    n_chunks = tile_rows // chunk

    def accumulate(masked, valid_rows):
        # valid_rows is a static Python int (rows valid in this tile).
        def chunk_body(j):
            if isinstance(j, int):
                r0 = j * chunk
            else:
                r0 = pl.multiple_of(j * chunk, chunk)
            p = pred_ref[pl.ds(r0, chunk), :].astype(jnp.float32)
            t = true_ref[pl.ds(r0, chunk), :].astype(jnp.float32)
            loss = _focal_elementwise(p, t, gamma, alpha)
            if masked:
                row = jax.lax.broadcasted_iota(jnp.int32, (chunk, 128), 0)
                loss = jnp.where(row + r0 < valid_rows, loss, 0.0)
            # VPU-only partial sum into the lane-dense (8,128) VMEM accumulator.
            out_ref[...] += loss.reshape(chunk // 8, 8, 128).sum(axis=0)

        if n_chunks <= 8:
            for j in range(n_chunks):                     # short, unrolled
                chunk_body(j)
        else:
            pl.loop(0, n_chunks)(chunk_body)              # bounded live ranges

    last_valid = rows - (steps_total - 1) * tile_rows     # static Python int
    if last_valid == tile_rows:
        # rows % tile_rows == 0: no masking anywhere.
        accumulate(False, tile_rows)
    elif steps_total == 1:
        accumulate(True, last_valid)
    else:
        g = c * steps_per_core + i                        # global step index

        @pl.when(g != steps_total - 1)
        def _():
            accumulate(False, tile_rows)

        @pl.when(g == steps_total - 1)                    # mask last tile only
        def _():
            accumulate(True, last_valid)


def focal_loss(pred, true, *, gamma=GAMMA, alpha=ALPHA, tile_rows=4096,
               num_cores=None):
    assert pred.shape == true.shape, (pred.shape, true.shape)
    n = int(pred.size)
    if n == 0:
        return jnp.zeros((), jnp.float32)

    # Keep native floating dtypes (f32/bf16/f16) end-to-end; the kernel casts
    # per chunk. Only non-float (bool/int) targets are widened here.
    def _prep(x):
        if not jnp.issubdtype(x.dtype, jnp.floating):
            x = x.astype(jnp.float32)
        return x.reshape(-1)

    pred_f = _prep(pred)
    true_f = _prep(true)

    n_main = (n // 1024) * 1024         # multiple of one (8,128) vreg of rows
    total = jnp.zeros((), jnp.float32)

    if n_main:
        rows = n_main // 128            # multiple of 8
        if n_main == n:
            pred2d = pred_f.reshape(rows, 128)          # zero-copy reshape
            true2d = true_f.reshape(rows, 128)
        else:
            # Vreg-aligned prefix only (instead of jnp.pad of the whole slab).
            pred2d = pred_f[:n_main].reshape(rows, 128)
            true2d = true_f[:n_main].reshape(rows, 128)

        # Tile rows: big (amortizes per-step overhead) but never larger than
        # the array; multiple of 128 when chunked, multiple of 8 otherwise.
        tr = min(int(tile_rows), rows)
        tr = (tr // 128) * 128 if tr >= 128 else (tr // 8) * 8
        tr = max(8, tr)
        chunk = min(128, tr)            # divides tr by construction
        steps_total = _cdiv(rows, tr)

        cores = _num_tensorcores() if num_cores is None else int(num_cores)
        if cores < 1 or steps_total % cores != 0:
            cores = 1                   # single-TC chips / non-divisible grids
        steps_per_core = steps_total // cores

        kernel = functools.partial(
            _focal_loss_kernel, gamma=gamma, alpha=alpha, tile_rows=tr,
            chunk=chunk, rows=rows, steps_per_core=steps_per_core,
            steps_total=steps_total)

        in_map = lambda c, i: (c * steps_per_core + i, 0)

        itemsize = pred2d.dtype.itemsize + true2d.dtype.itemsize
        buf_bytes = 2 * tr * 128 * itemsize        # double-buffered input tiles
        vmem_limit = None
        if buf_bytes > 12 * 1024 * 1024:           # only when tiles are enlarged
            vmem_limit = int(buf_bytes + 8 * 1024 * 1024)

        partials = pl.pallas_call(
            kernel,
            out_shape=jax.ShapeDtypeStruct((cores, 8, 128), jnp.float32),
            grid_spec=pltpu.PrefetchScalarGridSpec(
                num_scalar_prefetch=0,
                grid=(cores, steps_per_core),
                in_specs=[pl.BlockSpec((tr, 128), in_map),
                          pl.BlockSpec((tr, 128), in_map)],
                out_specs=pl.BlockSpec((None, 8, 128), lambda c, i: (c, 0, 0)),
            ),
            compiler_params=pltpu.CompilerParams(
                dimension_semantics=("parallel", "arbitrary"),
                vmem_limit_bytes=vmem_limit),
            cost_estimate=pl.CostEstimate(
                flops=20 * n_main,
                transcendentals=4 * n_main,       # exp, log1p, recip, sqrt
                bytes_accessed=rows * 128 * itemsize + cores * 8 * 128 * 4),
        )(pred2d, true2d)
        total = total + jnp.sum(partials)

    if n_main != n:
        # Sub-vreg tail (< 1024 elements): tiny XLA reduction instead of
        # padding both slabs or masking every kernel tile.
        tp = pred_f[n_main:].astype(jnp.float32)
        tt = true_f[n_main:].astype(jnp.float32)
        total = total + jnp.sum(_focal_elementwise(tp, tt, gamma, alpha))

    return total / n    # loss_fcn.reduction == 'mean'


def focal_loss_ref(pred, true, *, gamma=GAMMA, alpha=ALPHA):
    p = pred.astype(jnp.float32)
    t = true.astype(jnp.float32)
    bce = jnp.maximum(p, 0.0) - p * t + jnp.log1p(jnp.exp(-jnp.abs(p)))
    prob = jax.nn.sigmoid(p)
    p_t = t * prob + (1.0 - t) * (1.0 - prob)
    af = t * alpha + (1.0 - t) * (1.0 - alpha)
    mf = (1.0 - p_t) ** gamma
    return jnp.mean(bce * af * mf)


if __name__ == "__main__":
    key = jax.random.PRNGKey(0)
    k1, k2, k3, k4 = jax.random.split(key, 4)

    # Small YOLO-like prediction map: (batch=2, channels=4, H=16, W=16).
    pred = jax.random.normal(k1, (2, 4, 16, 16), dtype=jnp.float32)
    true = (jax.random.uniform(k2, (2, 4, 16, 16)) > 0.8).astype(jnp.float32)
    out = jax.block_until_ready(focal_loss(pred, true))
    ref = focal_loss_ref(pred, true)
    assert jnp.allclose(out, ref, rtol=1e-5, atol=1e-5), (out, ref)

    # Ragged element count (exercises the prefix/tail split, no padding).
    pred2 = jax.random.normal(k3, (3, 5, 7, 11), dtype=jnp.float32)
    true2 = (jax.random.uniform(k4, (3, 5, 7, 11)) > 0.8).astype(jnp.float32)
    out2 = jax.block_until_ready(focal_loss(pred2, true2))
    ref2 = focal_loss_ref(pred2, true2)
    assert jnp.allclose(out2, ref2, rtol=1e-5, atol=1e-5), (out2, ref2)

    # Narrow-dtype path: bf16 logits DMA'd natively, cast to f32 in-kernel.
    pred3 = pred.astype(jnp.bfloat16)
    out3 = jax.block_until_ready(focal_loss(pred3, true))
    ref3 = focal_loss_ref(pred3, true)
    assert jnp.allclose(out3, ref3, rtol=1e-5, atol=1e-5), (out3, ref3)

    print("KERNEL_OK")
</pallas_src>

<mosaic_0001>
module attributes {stable_mosaic.version = 11 : i64} {
  func.func @_focal_loss_kernel(%arg0: i32, %arg1: i32, %arg2: memref<16x128xf32, #tpu.memory_space<vmem>>, %arg3: memref<16x128xf32, #tpu.memory_space<vmem>>, %arg4: memref<1x8x128xf32, #tpu.memory_space<vmem>>) attributes {dimension_semantics = [#tpu.dimension_semantics<parallel>, #tpu.dimension_semantics<arbitrary>], iteration_bounds = array<i64: 1, 1>, scalar_prefetch = 0 : i64, scratch_operands = 0 : i64, tpu.core_type = #tpu.core_type<tc>, window_params = [{transform_indices = @transform_0, window_bounds = array<i64: 16, 128>}, {transform_indices = @transform_1, window_bounds = array<i64: 16, 128>}, {transform_indices = @transform_2, window_bounds = array<i64: 1, 8, 128>}]} {
    %c0_i32 = arith.constant 0 : i32
    %0 = arith.cmpi eq, %arg1, %c0_i32 : i32
    %1 = arith.extui %0 : i1 to i32
    %c0_i32_0 = arith.constant 0 : i32
    %2 = arith.cmpi ne, %1, %c0_i32_0 : i32
    scf.if %2 {
      %cst_19 = arith.constant 0.000000e+00 : f32
      %45 = vector.broadcast %cst_19 : f32 to vector<8x128xf32>
      %c0_20 = arith.constant 0 : index
      %c0_21 = arith.constant 0 : index
      %c0_22 = arith.constant 0 : index
      %46 = vector.load %arg4[%c0_20, %c0_21, %c0_22] : memref<1x8x128xf32, #tpu.memory_space<vmem>>, vector<1x8x128xf32>
      %47 = vector.shape_cast %46 : vector<1x8x128xf32> to vector<8x128xf32>
      %48 = vector.shape_cast %45 : vector<8x128xf32> to vector<1x8x128xf32>
      tpu.vector_store %arg4[%c0_20, %c0_21, %c0_22], %48 {strides = array<i32>} : memref<1x8x128xf32, #tpu.memory_space<vmem>>, vector<1x8x128xf32>,
    } else {
    }
    %c0 = arith.constant 0 : index
    %c0_1 = arith.constant 0 : index
    %3 = vector.load %arg2[%c0, %c0_1] : memref<16x128xf32, #tpu.memory_space<vmem>>, vector<16x128xf32>
    %c0_2 = arith.constant 0 : index
    %c0_3 = arith.constant 0 : index
    %4 = vector.load %arg3[%c0_2, %c0_3] : memref<16x128xf32, #tpu.memory_space<vmem>>, vector<16x128xf32>
    %5 = math.absf %3 : vector<16x128xf32>
    %cst = arith.constant 0.000000e+00 : f32
    %6 = vector.broadcast %cst : f32 to vector<16x128xf32>
    %7 = arith.subf %6, %5 : vector<16x128xf32>
    %8 = math.exp %7 : vector<16x128xf32>
    %cst_4 = arith.constant 0.000000e+00 : f32
    %9 = vector.broadcast %cst_4 : f32 to vector<16x128xf32>
    %10 = arith.maximumf %3, %9 : vector<16x128xf32>
    %11 = arith.mulf %3, %4 : vector<16x128xf32>
    %12 = arith.subf %10, %11 : vector<16x128xf32>
    %13 = math.log1p %8 : vector<16x128xf32>
    %14 = arith.addf %12, %13 : vector<16x128xf32>
    %cst_5 = arith.constant 1.000000e+00 : f32
    %15 = vector.broadcast %cst_5 : f32 to vector<16x128xf32>
    %16 = arith.addf %15, %8 : vector<16x128xf32>
    %cst_6 = arith.constant 1.000000e+00 : f32
    %17 = vector.broadcast %cst_6 : f32 to vector<16x128xf32>
    %18 = arith.divf %17, %16 : vector<16x128xf32>
    %cst_7 = arith.constant 0.000000e+00 : f32
    %19 = vector.broadcast %cst_7 : f32 to vector<16x128xf32>
    %20 = arith.cmpf oge, %3, %19 : vector<16x128xf32>
    %21 = arith.mulf %8, %18 : vector<16x128xf32>
    %22 = arith.select %20, %18, %21 : vector<16x128xi1>, vector<16x128xf32>
    %cst_8 = arith.constant 2.000000e+00 : f32
    %23 = vector.broadcast %cst_8 : f32 to vector<16x128xf32>
    %24 = arith.mulf %23, %22 : vector<16x128xf32>
    %cst_9 = arith.constant 1.000000e+00 : f32
    %25 = vector.broadcast %cst_9 : f32 to vector<16x128xf32>
    %26 = arith.subf %25, %24 : vector<16x128xf32>
    %27 = arith.mulf %4, %26 : vector<16x128xf32>
    %28 = arith.addf %22, %27 : vector<16x128xf32>
    %cst_10 = arith.constant -5.000000e-01 : f32
    %29 = vector.broadcast %cst_10 : f32 to vector<16x128xf32>
    %30 = arith.mulf %4, %29 : vector<16x128xf32>
    %cst_11 = arith.constant 7.500000e-01 : f32
    %31 = vector.broadcast %cst_11 : f32 to vector<16x128xf32>
    %32 = arith.addf %31, %30 : vector<16x128xf32>
    %33 = math.sqrt %28 : vector<16x128xf32>
    %34 = arith.mulf %28, %33 : vector<16x128xf32>
    %35 = arith.mulf %14, %32 : vector<16x128xf32>
    %36 = arith.mulf %35, %34 : vector<16x128xf32>
    %c0_12 = arith.constant 0 : index
    %c0_13 = arith.constant 0 : index
    %c0_14 = arith.constant 0 : index
    %37 = vector.load %arg4[%c0_12, %c0_13, %c0_14] : memref<1x8x128xf32, #tpu.memory_space<vmem>>, vector<1x8x128xf32>
    %38 = vector.shape_cast %37 : vector<1x8x128xf32> to vector<8x128xf32>
    %39 = vector.shape_cast %36 : vector<16x128xf32> to vector<2x8x128xf32>
    %cst_15 = arith.constant dense<0.000000e+00> : vector<8x128xf32>
    %40 = vector.multi_reduction <add>, %39, %cst_15 [0] : vector<2x8x128xf32> to vector<8x128xf32>
    %41 = arith.addf %38, %40 : vector<8x128xf32>
    %c0_16 = arith.constant 0 : index
    %c0_17 = arith.constant 0 : index
    %c0_18 = arith.constant 0 : index
    %42 = vector.load %arg4[%c0_16, %c0_17, %c0_18] : memref<1x8x128xf32, #tpu.memory_space<vmem>>, vector<1x8x128xf32>
    %43 = vector.shape_cast %42 : vector<1x8x128xf32> to vector<8x128xf32>
    %44 = vector.shape_cast %41 : vector<8x128xf32> to vector<1x8x128xf32>
    tpu.vector_store %arg4[%c0_16, %c0_17, %c0_18], %44 {strides = array<i32>} : memref<1x8x128xf32, #tpu.memory_space<vmem>>, vector<1x8x128xf32>,
    return
  }
  func.func @transform_0(%arg0: i32, %arg1: i32) -> (i32, i32) {
    %c1_i32 = arith.constant 1 : i32
    %0 = arith.muli %arg0, %c1_i32 : i32
    %1 = arith.addi %0, %arg1 : i32
    %c0_i32 = arith.constant 0 : i32
    %c0_i32_0 = arith.constant 0 : i32
    return %1, %c0_i32 : i32, i32
  }
  func.func @transform_1(%arg0: i32, %arg1: i32) -> (i32, i32) {
    %c1_i32 = arith.constant 1 : i32
    %0 = arith.muli %arg0, %c1_i32 : i32
    %1 = arith.addi %0, %arg1 : i32
    %c0_i32 = arith.constant 0 : i32
    %c0_i32_0 = arith.constant 0 : i32
    return %1, %c0_i32 : i32, i32
  }
  func.func @transform_2(%arg0: i32, %arg1: i32) -> (i32, i32, i32) {
    %c0_i32 = arith.constant 0 : i32
    %c0_i32_0 = arith.constant 0 : i32
    %c0_i32_1 = arith.constant 0 : i32
    return %arg0, %c0_i32, %c0_i32_0 : i32, i32, i32
  }
}

</mosaic_0001>

<llo_original>
// kernel: tpu_custom_call.1
$region0: #{tpu_custom_call.1}
  #allocation0 [shape = 'u32[]', space=smem, size = 0x4, offset = 0x4, fixed_abs, tag = 'smem constant byte address 0x4 - core index']
  #allocation1 [shape = 'u32[144,128]{1,0:T(1,128)}', space=vmem, size = 0x12000, scoped, tag = 'internal scratch']
  %s0 = inlined_call_operand.hbm [shape: f32[16,128], index: 0, kind: input, shape index: {}]
  %s1 = inlined_call_operand.hbm [shape: f32[16,128], index: 1, kind: input, shape index: {}]
  %s2 = inlined_call_operand.hbm [shape: f32[1,8,128], index: 2, kind: output, shape index: {}]
  %s3 = sld [smem:[#allocation0]]
  $region30: #{tpu_custom_call.1} parent=0
    _
  %s5 = ssub.s32 1, %s3
  %s6 = scalar_select 0, %s5, %s3
  $region1: #{tpu_custom_call.1} parent=0
    #allocation2 [shape = 'u8[8192]{0}', space=vmem, size = 0x2000, scoped, tag = 'input window, operand 0, single buffered']
    #allocation3 [shape = 's32[1]{0}', space=sflag, size = 0x4, scoped, tag = 'scoped memory for tpu_custom_call.1']
    #allocation4 [shape = 's32[1]{0}', space=sflag, size = 0x4, scoped, tag = 'scoped memory for tpu_custom_call.1']
    #allocation5 [shape = 'u8[8192]{0}', space=vmem, size = 0x2000, scoped, tag = 'input window, operand 1, single buffered']
    #allocation6 [shape = 's32[1]{0}', space=sflag, size = 0x4, scoped, tag = 'scoped memory for tpu_custom_call.1']
    #allocation7 [shape = 'u8[4096]{0}', space=vmem, size = 0x1000, scoped, tag = 'output window, operand 0, single buffered']
    %7 = vsyncpa [#allocation3], 0
    %8 = vsyncpa [#allocation6], 0
    %9 = vsyncpa [#allocation4], 0
    // Predicated region
    $region2: #{tpu_custom_call.1} parent=1 // pred_check
      _
    $region3: #{tpu_custom_call.1} parent=1 // pred_check_branch
      %11 = sbr.rel (0) target = $region5
    $region4: #{tpu_custom_call.1} parent=1 // pred_region
      %s12 = sadd.s32 0, 0
      %s13 = smul.u32 2, %s12
      %s15 = ssub.s32 256, 256
      %16 = vsyncadd [#allocation3], %s15
      %s17 = smul.addr %s13, 128
      %s18 = scalar_lea.hbm %s0, %s17
      %s19 = sshll.u32 [#allocation2], 4
      %s20 = int_to_ptr.vmem [resolvable:$true] %s19
      %25 = dma.hbm_to_vmem [thread:$0]  %s18, 256, %s20, [#allocation3], 128, 128, 8
    $region5: #{tpu_custom_call.1} parent=1 // pred_fallthru
      _
    // Predicated region
    $region6: #{tpu_custom_call.1} parent=1 // pred_check
      _
    $region7: #{tpu_custom_call.1} parent=1 // pred_check_branch
      %27 = sbr.rel (0) target = $region9
    $region8: #{tpu_custom_call.1} parent=1 // pred_region
      %s28 = sadd.s32 0, 0
      %s29 = smul.u32 2, %s28
      %s31 = ssub.s32 256, 256
      %32 = vsyncadd [#allocation6], %s31
      %s33 = smul.addr %s29, 128
      %s34 = scalar_lea.hbm %s1, %s33
      %s35 = sshll.u32 [#allocation5], 4
      %s36 = int_to_ptr.vmem [resolvable:$true] %s35
      %41 = dma.hbm_to_vmem [thread:$0]  %s34, 256, %s36, [#allocation6], 128, 128, 8
    $region9: #{tpu_custom_call.1} parent=1 // pred_fallthru
      _
    // Predicated region
    $region10: #{tpu_custom_call.1} parent=1 // pred_check
      _
    $region11: #{tpu_custom_call.1} parent=1 // pred_check_branch
      %43 = sbr.rel (0) target = $region13
    $region12: #{tpu_custom_call.1} parent=1 // pred_region
      %44 = dma.done [#allocation3], 256
    $region13: #{tpu_custom_call.1} parent=1 // pred_fallthru
      _
    // Predicated region
    $region14: #{tpu_custom_call.1} parent=1 // pred_check
      _
    $region15: #{tpu_custom_call.1} parent=1 // pred_check_branch
      %46 = sbr.rel (0) target = $region17
    $region16: #{tpu_custom_call.1} parent=1 // pred_region
      %47 = dma.done [#allocation6], 256
    $region17: #{tpu_custom_call.1} parent=1 // pred_fallthru
      _
    %s48 = sadd.s32 0, 0
    %s49 = smul.u32 2, %s48
    %s50 = sadd.s32 0, 0
    %s51 = smul.u32 2, %s50
    %p52 = scmp.eq.s32.totalorder 0, 0
    // Predicated region
    $region18: #{tpu_custom_call.1} parent=1 // pred_check
      %p53 = pneg %p52
    $region19: #{tpu_custom_call.1} parent=1 // pred_check_branch
      %55 = sbr.rel (%p53) target = $region21
    $region20: #{tpu_custom_call.1} parent=1 // pred_region
      %56 = vst [vmem:[#allocation7] sm:$0xff] 0.0
    $region21: #{tpu_custom_call.1} parent=1 // pred_fallthru
      _
    %v57 = vld [vmem:[#allocation2] sm:$0xff]
    %v58 = vld [vmem:[#allocation2 + $0x8] sm:$0xff]
    %v59 = vld [vmem:[#allocation5] sm:$0xff]
    %v60 = vld [vmem:[#allocation5 + $0x8] sm:$0xff]
    %v61 = vand.u32 2147483647, %v57
    %v62 = vand.u32 2147483647, %v58
    %v63 = vsub.f32 0.0, %v61
    %v64 = vsub.f32 0.0, %v62
    %v65 = vmul.f32 %v63, 1.442695
    %v66 = vpow.pop %v65
    %v67 = vmul.f32 %v64, 1.442695
    %v68 = vpow.pop %v67
    %v69 = vmax.f32 %v57, 0.0
    %v70 = vmax.f32 %v58, 0.0
    %v71 = vmul.f32 %v57, %v59
    %v72 = vmul.f32 %v58, %v60
    %v73 = vsub.f32 %v69, %v71
    %v74 = vsub.f32 %v70, %v72
    %v75 = vadd.f32 %v66, 1.0
    %v76 = vlog2.pop %v75
    %v77 = vmul.f32 %v76, 0.6931472
    %v78 = vmul.f32 -0.5, %v66
    %v79 = vadd.f32 %v78, 1.0
    %v80 = vmul.f32 %v79, %v66
    %v81 = vand.u32 2147483647, %v66
    %vm82 = vcmp.lt.f32.partialorder %v81, 0.0004427343
    %v83 = vsel %vm82, %v80, %v77
    %v84 = vadd.f32 %v68, 1.0
    %v85 = vlog2.pop %v84
    %v86 = vmul.f32 %v85, 0.6931472
    %v87 = vmul.f32 -0.5, %v68
    %v88 = vadd.f32 %v87, 1.0
    %v89 = vmul.f32 %v88, %v68
    %v90 = vand.u32 2147483647, %v68
    %vm91 = vcmp.lt.f32.partialorder %v90, 0.0004427343
    %v92 = vsel %vm91, %v89, %v86
    %v93 = vadd.f32 %v73, %v83
    %v94 = vadd.f32 %v74, %v92
    %v95 = vadd.f32 %v66, 1.0
    %v96 = vadd.f32 %v68, 1.0
    %v97 = vrcp.pop %v95
    %v98 = vmul.f32 1.0, %v97
    %v99 = vrcp.pop %v96
    %v100 = vmul.f32 1.0, %v99
    %vm101 = vcmp.ge.f32.partialorder %v57, 0.0
    %vm102 = vcmp.ge.f32.partialorder %v58, 0.0
    %v103 = vmul.f32 %v66, %v98
    %v104 = vmul.f32 %v68, %v100
    %v105 = vsel %vm101, %v98, %v103
    %v106 = vsel %vm102, %v100, %v104
    %v107 = vmul.f32 %v105, 2.0
    %v108 = vmul.f32 %v106, 2.0
    %v109 = vsub.f32 1.0, %v107
    %v110 = vsub.f32 1.0, %v108
    %v111 = vmul.f32 %v59, %v109
    %v112 = vmul.f32 %v60, %v110
    %v113 = vadd.f32 %v105, %v111
    %v114 = vadd.f32 %v106, %v112
    %v115 = vmul.f32 %v59, -0.5
    %v116 = vmul.f32 %v60, -0.5
    %v117 = vadd.f32 %v115, 0.75
    %v118 = vadd.f32 %v116, 0.75
    %v119 = vrsqrt.pop %v113
    %v120 = vmul.f32 %v113, %v119
    %vm121 = vcmp.eq.f32.partialorder %v113, inf
    %v122 = vsel %vm121, %v113, %v120
    %vm123 = vcmp.eq.f32.partialorder %v113, 0.0
    %v124 = vand.u32 %v113, 2147483648
    %v125 = vsel %vm123, %v124, %v122
    %v126 = vrsqrt.pop %v114
    %v127 = vmul.f32 %v114, %v126
    %vm128 = vcmp.eq.f32.partialorder %v114, inf
    %v129 = vsel %vm128, %v114, %v127
    %vm130 = vcmp.eq.f32.partialorder %v114, 0.0
    %v131 = vand.u32 %v114, 2147483648
    %v132 = vsel %vm130, %v131, %v129
    %v133 = vmul.f32 %v113, %v125
    %v134 = vmul.f32 %v114, %v132
    %v135 = vmul.f32 %v93, %v117
    %v136 = vmul.f32 %v94, %v118
    %v137 = vmul.f32 %v135, %v133
    %v138 = vmul.f32 %v136, %v134
    %v139 = vld [vmem:[#allocation7] sm:$0xff]
    %v140 = vadd.f32 %v137, %v138
    %v141 = vadd.f32 %v139, %v140
    %142 = vst [vmem:[#allocation7] sm:$0xff] %v141
    // Predicated region
    $region22: #{tpu_custom_call.1} parent=1 // pred_check
      _
    $region23: #{tpu_custom_call.1} parent=1 // pred_check_branch
      %144 = sbr.rel (0) target = $region25
    $region24: #{tpu_custom_call.1} parent=1 // pred_region
      %s146 = ssub.s32 128, 128
      %147 = vsyncadd [#allocation4], %s146
      %s149 = sshll.u32 [#allocation7], 4
      %s150 = int_to_ptr.vmem [resolvable:$true] %s149
      %152 = dma.vmem_to_hbm [thread:$0]  %s150, 128, %s2, [#allocation4]
    $region25: #{tpu_custom_call.1} parent=1 // pred_fallthru
      _
    // Predicated region
    $region26: #{tpu_custom_call.1} parent=1 // pred_check
      _
    $region27: #{tpu_custom_call.1} parent=1 // pred_check_branch
      %154 = sbr.rel (0) target = $region29
    $region28: #{tpu_custom_call.1} parent=1 // pred_region
      %155 = dma.done [#allocation4], 128
    $region29: #{tpu_custom_call.1} parent=1 // pred_fallthru
      _
    %156 = vsyncpa [#allocation3], 1
    %157 = vsyncpa [#allocation6], 1
    %158 = vsyncpa [#allocation4], 1

</llo_original>
